<compile_context>
chip_gen: v7x
topology: tpu7x:2x2x1
jax: 0.10.0
libtpu: 0.0.40
codegen_flags: <defaults>
</compile_context>

<pallas_src>
import functools

import jax
import jax.numpy as jnp
from jax.experimental import pallas as pl
from jax.experimental.pallas import tpu as pltpu


# --------------------------------------------------------------------------
# chip- / dtype-aware tile sizing
# --------------------------------------------------------------------------
def _vmem_budget_and_limit():
    """(input working-set budget, vmem_limit_bytes) derived from the chip."""
    try:
        vmem = int(pltpu.get_tpu_info().vmem_capacity_bytes)
    except Exception:
        vmem = 64 << 20                 # assume smallest part (v7x, 64 MiB/TC)
    if vmem >= (100 << 20):             # v5e / v6e: 128 MiB VMEM
        return 40 << 20, 96 << 20
    return 16 << 20, 40 << 20           # v7x: 64 MiB VMEM per TensorCore


def _row_multiple(dtype):
    """Sublane packing: 8 rows for 4-byte, 16 for 2-byte, 32 for 1-byte dtypes."""
    isz = jnp.dtype(dtype).itemsize
    if isz >= 4:
        return 8
    if isz == 2:
        return 16
    return 32


def _pick_tile_n(n, per_row_bytes, budget_bytes, mult):
    """Rows per tile so the double-buffered input working set fits the budget."""
    tn = budget_bytes // (2 * max(per_row_bytes, 1))   # 2 pipeline buffers
    tn = max(mult, (tn // mult) * mult)
    if tn >= n:
        return n                        # full-extent block is always legal
    return tn


def _normalize_tile(n, tile_n, mult):
    if tile_n is None or tile_n >= n:
        return n
    return max(mult, (tile_n // mult) * mult)


# --------------------------------------------------------------------------
# kernel bodies
# --------------------------------------------------------------------------
def _masked_xent_sum(logits, labels, row0, n_valid):
    """Sum over valid rows of -log softmax(logits)[label]; padded rows masked."""
    logits = logits.astype(jnp.float32)                 # upcast in vregs only
    tn, c = logits.shape
    m = jnp.max(logits, axis=-1, keepdims=True)
    shifted = logits - m
    lse = jnp.log(jnp.sum(jnp.exp(shifted), axis=-1, keepdims=True))      # [TN,1]
    col = jax.lax.broadcasted_iota(jnp.int32, (tn, c), 1)
    tgt = jnp.sum(jnp.where(col == labels, shifted, 0.0), axis=-1, keepdims=True)
    nll = lse - tgt                                                        # [TN,1]
    row = jax.lax.broadcasted_iota(jnp.int32, (tn, 1), 0) + row0
    nll = jnp.where(row < n_valid, nll, 0.0)   # true select: drops NaN/Inf rows
    return jnp.sum(nll)


def _train_kernel(n, cls_ref, lab_ref, grp_ref, out_ref):
    i = pl.program_id(0)
    tn = cls_ref.shape[0]
    row0 = i * tn
    labs = lab_ref[...]                                   # (tn, 2) int32
    cls_s = _masked_xent_sum(cls_ref[...], labs[:, 0:1], row0, n)
    grp_s = _masked_xent_sum(grp_ref[...], labs[:, 1:2], row0, n)
    # One lane-dense (8,128) block per grid step: sublane 0 <- cls partial,
    # sublane 1 <- grp partial.  No cross-step state => "parallel" grid axis.
    r = jax.lax.broadcasted_iota(jnp.int32, (8, 128), 0)
    out_ref[...] = jnp.where(r == 0, cls_s,
                             jnp.where(r == 1, grp_s, jnp.float32(0.0)))


def _eval_kernel(n, pred_ref, lab_ref, out_ref):
    i = pl.program_id(0)
    tn = pred_ref.shape[0]
    s = _masked_xent_sum(pred_ref[...], lab_ref[...], i * tn, n)
    r = jax.lax.broadcasted_iota(jnp.int32, (8, 128), 0)
    out_ref[...] = jnp.where(r == 0, s, jnp.float32(0.0))


# --------------------------------------------------------------------------
# wrappers (forward of GradCrit)
# --------------------------------------------------------------------------
def grad_crit_forward_train(cls_pred, group_pred, target, attribute, lmb, *,
                            tile_n=None):
    """training=True path: input = (cls_pred, group_pred)."""
    n, c_cls = cls_pred.shape
    _, c_grp = group_pred.shape
    labels = jnp.stack(
        [target["target"].reshape(n).astype(jnp.int32),
         target[attribute].reshape(n).astype(jnp.int32)], axis=-1)      # (n, 2)

    itemsize = jnp.dtype(cls_pred.dtype).itemsize
    mult = _row_multiple(cls_pred.dtype)
    budget, vmem_limit = _vmem_budget_and_limit()
    per_row_bytes = (c_cls + c_grp) * itemsize + 2 * 4
    if tile_n is None:
        tn = _pick_tile_n(n, per_row_bytes, budget, mult)
    else:
        tn = _normalize_tile(n, tile_n, mult)
    num_tiles = int(pl.cdiv(n, tn))

    cost = pl.CostEstimate(
        flops=int(5 * n * (c_cls + c_grp)),
        transcendentals=int(n * (c_cls + c_grp) + 2 * n),
        bytes_accessed=int(n * per_row_bytes + num_tiles * 8 * 128 * 4),
    )

    parts = pl.pallas_call(
        functools.partial(_train_kernel, n),
        out_shape=jax.ShapeDtypeStruct((num_tiles * 8, 128), jnp.float32),
        grid=(num_tiles,),
        in_specs=[
            pl.BlockSpec((tn, c_cls), lambda i: (i, 0)),   # cls logits
            pl.BlockSpec((tn, 2), lambda i: (i, 0)),       # packed labels
            pl.BlockSpec((tn, c_grp), lambda i: (i, 0)),   # group logits
        ],
        out_specs=pl.BlockSpec((8, 128), lambda i: (i, 0)),
        compiler_params=pltpu.CompilerParams(
            dimension_semantics=("parallel",),
            vmem_limit_bytes=vmem_limit),
        cost_estimate=cost,
    )(cls_pred, labels, group_pred)

    parts = parts.reshape(num_tiles, 8, 128)
    cls_mean = jnp.sum(parts[:, 0, 0]) * jnp.float32(1.0 / n)
    grp_mean = jnp.sum(parts[:, 1, 0]) * jnp.float32(1.0 / n)
    return cls_mean + jnp.asarray(lmb, jnp.float32) * grp_mean


def grad_crit_forward_eval(pred, target, *, tile_n=None):
    """training=False path: plain criterion on input vs target['target']."""
    n, c = pred.shape
    labels = target["target"].reshape(n, 1).astype(jnp.int32)

    itemsize = jnp.dtype(pred.dtype).itemsize
    mult = _row_multiple(pred.dtype)
    budget, vmem_limit = _vmem_budget_and_limit()
    per_row_bytes = c * itemsize + 4
    if tile_n is None:
        tn = _pick_tile_n(n, per_row_bytes, budget, mult)
    else:
        tn = _normalize_tile(n, tile_n, mult)
    num_tiles = int(pl.cdiv(n, tn))

    cost = pl.CostEstimate(
        flops=int(5 * n * c),
        transcendentals=int(n * c + n),
        bytes_accessed=int(n * per_row_bytes + num_tiles * 8 * 128 * 4),
    )

    parts = pl.pallas_call(
        functools.partial(_eval_kernel, n),
        out_shape=jax.ShapeDtypeStruct((num_tiles * 8, 128), jnp.float32),
        grid=(num_tiles,),
        in_specs=[
            pl.BlockSpec((tn, c), lambda i: (i, 0)),
            pl.BlockSpec((tn, 1), lambda i: (i, 0)),
        ],
        out_specs=pl.BlockSpec((8, 128), lambda i: (i, 0)),
        compiler_params=pltpu.CompilerParams(
            dimension_semantics=("parallel",),
            vmem_limit_bytes=vmem_limit),
        cost_estimate=cost,
    )(pred, labels)

    parts = parts.reshape(num_tiles, 8, 128)
    return jnp.sum(parts[:, 0, 0]) * jnp.float32(1.0 / n)


# ---- pure-JAX reference for correctness checking -------------------------
def _xent_ref(logits, labels):
    logp = jax.nn.log_softmax(logits.astype(jnp.float32), axis=-1)
    return -jnp.mean(jnp.take_along_axis(logp, labels[:, None], axis=-1))


if __name__ == "__main__":
    key = jax.random.PRNGKey(0)
    k1, k2, k3, k4 = jax.random.split(key, 4)

    N, C_CLS, C_GRP = 20, 32, 8          # N deliberately not a multiple of 8
    LMB = 0.5
    ATTRIBUTE = "gender"

    cls_pred = jax.random.normal(k1, (N, C_CLS), dtype=jnp.float32)
    group_pred = jax.random.normal(k2, (N, C_GRP), dtype=jnp.float32)
    target = {
        "target": jax.random.randint(k3, (N,), 0, C_CLS, dtype=jnp.int32),
        ATTRIBUTE: jax.random.randint(k4, (N,), 0, C_GRP, dtype=jnp.int32),
    }

    # training path: default (single tile) + forced multi-tile (exercises the
    # parallel per-tile partials, boundary-row masking, wrapper-side reduce)
    loss_train = jax.block_until_ready(
        grad_crit_forward_train(cls_pred, group_pred, target, ATTRIBUTE, LMB))
    loss_train_tiled = jax.block_until_ready(
        grad_crit_forward_train(cls_pred, group_pred, target, ATTRIBUTE, LMB,
                                tile_n=8))

    # eval path
    loss_eval = jax.block_until_ready(grad_crit_forward_eval(cls_pred, target))
    loss_eval_tiled = jax.block_until_ready(
        grad_crit_forward_eval(cls_pred, target, tile_n=8))

    # bf16 inputs (exercises dtype-aware sizing: 16-row multiple, 2-byte DMAs)
    cls_bf = cls_pred.astype(jnp.bfloat16)
    grp_bf = group_pred.astype(jnp.bfloat16)
    loss_train_bf16 = jax.block_until_ready(
        grad_crit_forward_train(cls_bf, grp_bf, target, ATTRIBUTE, LMB,
                                tile_n=16))

    # references
    ref_train = (_xent_ref(cls_pred, target["target"])
                 + LMB * _xent_ref(group_pred, target[ATTRIBUTE]))
    ref_eval = _xent_ref(cls_pred, target["target"])
    ref_train_bf16 = (_xent_ref(cls_bf, target["target"])
                      + LMB * _xent_ref(grp_bf, target[ATTRIBUTE]))

    assert jnp.allclose(loss_train, ref_train, rtol=1e-5, atol=1e-5), (
        loss_train, ref_train)
    assert jnp.allclose(loss_train_tiled, ref_train, rtol=1e-5, atol=1e-5), (
        loss_train_tiled, ref_train)
    assert jnp.allclose(loss_eval, ref_eval, rtol=1e-5, atol=1e-5), (
        loss_eval, ref_eval)
    assert jnp.allclose(loss_eval_tiled, ref_eval, rtol=1e-5, atol=1e-5), (
        loss_eval_tiled, ref_eval)
    assert jnp.allclose(loss_train_bf16, ref_train_bf16, rtol=1e-4, atol=1e-4), (
        loss_train_bf16, ref_train_bf16)

    print("KERNEL_OK")
</pallas_src>

<mosaic_0001>
module attributes {stable_mosaic.version = 11 : i64} {
  func.func @_train_kernel(%arg0: i32, %arg1: memref<20x32xf32, #tpu.memory_space<vmem>>, %arg2: memref<20x2xi32, #tpu.memory_space<vmem>>, %arg3: memref<20x8xf32, #tpu.memory_space<vmem>>, %arg4: memref<8x128xf32, #tpu.memory_space<vmem>>) attributes {dimension_semantics = [#tpu.dimension_semantics<parallel>], iteration_bounds = array<i64: 1>, scalar_prefetch = 0 : i64, scratch_operands = 0 : i64, tpu.core_type = #tpu.core_type<tc>, window_params = [{transform_indices = @transform_0, window_bounds = array<i64: 20, 32>}, {transform_indices = @transform_1, window_bounds = array<i64: 20, 2>}, {transform_indices = @transform_2, window_bounds = array<i64: 20, 8>}, {transform_indices = @transform_3, window_bounds = array<i64: 8, 128>}]} {
    %c20_i32 = arith.constant 20 : i32
    %0 = arith.muli %arg0, %c20_i32 : i32
    %c0 = arith.constant 0 : index
    %c0_0 = arith.constant 0 : index
    %1 = vector.load %arg2[%c0, %c0_0] : memref<20x2xi32, #tpu.memory_space<vmem>>, vector<20x2xi32>
    %c0_1 = arith.constant 0 : index
    %c0_2 = arith.constant 0 : index
    %2 = vector.load %arg1[%c0_1, %c0_2] : memref<20x32xf32, #tpu.memory_space<vmem>>, vector<20x32xf32>
    %3 = vector.extract_strided_slice %1 {offsets = [0, 0], sizes = [20, 1], strides = [1, 1]} : vector<20x2xi32> to vector<20x1xi32>
    %cst = arith.constant dense<0xFF800000> : vector<20xf32>
    %4 = vector.multi_reduction <maximumf>, %2, %cst [1] : vector<20x32xf32> to vector<20xf32>
    %5 = vector.shape_cast %4 : vector<20xf32> to vector<20x1xf32>
    %6 = vector.broadcast %5 : vector<20x1xf32> to vector<20x32xf32>
    %7 = arith.subf %2, %6 : vector<20x32xf32>
    %8 = math.exp %7 : vector<20x32xf32>
    %cst_3 = arith.constant dense<0.000000e+00> : vector<20xf32>
    %9 = vector.multi_reduction <add>, %8, %cst_3 [1] : vector<20x32xf32> to vector<20xf32>
    %10 = vector.shape_cast %9 : vector<20xf32> to vector<20x1xf32>
    %11 = math.log %10 : vector<20x1xf32>
    %12 = tpu.iota {dimensions = array<i32: 1>} : vector<20x32xi32>
    %13 = vector.broadcast %3 : vector<20x1xi32> to vector<20x32xi32>
    %14 = arith.cmpi eq, %12, %13 : vector<20x32xi32>
    %cst_4 = arith.constant 0.000000e+00 : f32
    %15 = vector.broadcast %cst_4 : f32 to vector<20x32xf32>
    %16 = arith.select %14, %7, %15 : vector<20x32xi1>, vector<20x32xf32>
    %cst_5 = arith.constant dense<0.000000e+00> : vector<20xf32>
    %17 = vector.multi_reduction <add>, %16, %cst_5 [1] : vector<20x32xf32> to vector<20xf32>
    %18 = vector.shape_cast %17 : vector<20xf32> to vector<20x1xf32>
    %19 = arith.subf %11, %18 : vector<20x1xf32>
    %20 = tpu.iota {dimensions = array<i32: 0>} : vector<20x1xi32>
    %21 = vector.broadcast %0 : i32 to vector<20x1xi32>
    %22 = arith.addi %20, %21 : vector<20x1xi32>
    %c20_i32_6 = arith.constant 20 : i32
    %23 = vector.broadcast %c20_i32_6 : i32 to vector<20x1xi32>
    %24 = arith.cmpi slt, %22, %23 : vector<20x1xi32>
    %cst_7 = arith.constant 0.000000e+00 : f32
    %25 = vector.broadcast %cst_7 : f32 to vector<20x1xf32>
    %26 = arith.select %24, %19, %25 : vector<20x1xi1>, vector<20x1xf32>
    %27 = vector.shape_cast %26 : vector<20x1xf32> to vector<1x20x1xf32>
    %cst_8 = arith.constant dense<0.000000e+00> : vector<1xf32>
    %28 = vector.multi_reduction <add>, %27, %cst_8 [1, 2] : vector<1x20x1xf32> to vector<1xf32>
    %29 = vector.shape_cast %28 : vector<1xf32> to vector<1x1x1xf32>
    %30 = vector.extract %29[0, 0, 0] : f32 from vector<1x1x1xf32>
    %c0_9 = arith.constant 0 : index
    %c0_10 = arith.constant 0 : index
    %31 = vector.load %arg3[%c0_9, %c0_10] : memref<20x8xf32, #tpu.memory_space<vmem>>, vector<20x8xf32>
    %32 = vector.extract_strided_slice %1 {offsets = [0, 1], sizes = [20, 1], strides = [1, 1]} : vector<20x2xi32> to vector<20x1xi32>
    %cst_11 = arith.constant dense<0xFF800000> : vector<20xf32>
    %33 = vector.multi_reduction <maximumf>, %31, %cst_11 [1] : vector<20x8xf32> to vector<20xf32>
    %34 = vector.shape_cast %33 : vector<20xf32> to vector<20x1xf32>
    %35 = vector.broadcast %34 : vector<20x1xf32> to vector<20x8xf32>
    %36 = arith.subf %31, %35 : vector<20x8xf32>
    %37 = math.exp %36 : vector<20x8xf32>
    %cst_12 = arith.constant dense<0.000000e+00> : vector<20xf32>
    %38 = vector.multi_reduction <add>, %37, %cst_12 [1] : vector<20x8xf32> to vector<20xf32>
    %39 = vector.shape_cast %38 : vector<20xf32> to vector<20x1xf32>
    %40 = math.log %39 : vector<20x1xf32>
    %41 = tpu.iota {dimensions = array<i32: 1>} : vector<20x8xi32>
    %42 = vector.broadcast %32 : vector<20x1xi32> to vector<20x8xi32>
    %43 = arith.cmpi eq, %41, %42 : vector<20x8xi32>
    %cst_13 = arith.constant 0.000000e+00 : f32
    %44 = vector.broadcast %cst_13 : f32 to vector<20x8xf32>
    %45 = arith.select %43, %36, %44 : vector<20x8xi1>, vector<20x8xf32>
    %cst_14 = arith.constant dense<0.000000e+00> : vector<20xf32>
    %46 = vector.multi_reduction <add>, %45, %cst_14 [1] : vector<20x8xf32> to vector<20xf32>
    %47 = vector.shape_cast %46 : vector<20xf32> to vector<20x1xf32>
    %48 = arith.subf %40, %47 : vector<20x1xf32>
    %49 = tpu.iota {dimensions = array<i32: 0>} : vector<20x1xi32>
    %50 = vector.broadcast %0 : i32 to vector<20x1xi32>
    %51 = arith.addi %49, %50 : vector<20x1xi32>
    %c20_i32_15 = arith.constant 20 : i32
    %52 = vector.broadcast %c20_i32_15 : i32 to vector<20x1xi32>
    %53 = arith.cmpi slt, %51, %52 : vector<20x1xi32>
    %cst_16 = arith.constant 0.000000e+00 : f32
    %54 = vector.broadcast %cst_16 : f32 to vector<20x1xf32>
    %55 = arith.select %53, %48, %54 : vector<20x1xi1>, vector<20x1xf32>
    %56 = vector.shape_cast %55 : vector<20x1xf32> to vector<1x20x1xf32>
    %cst_17 = arith.constant dense<0.000000e+00> : vector<1xf32>
    %57 = vector.multi_reduction <add>, %56, %cst_17 [1, 2] : vector<1x20x1xf32> to vector<1xf32>
    %58 = vector.shape_cast %57 : vector<1xf32> to vector<1x1x1xf32>
    %59 = vector.extract %58[0, 0, 0] : f32 from vector<1x1x1xf32>
    %60 = tpu.iota {dimensions = array<i32: 0>} : vector<8x128xi32>
    %c0_i32 = arith.constant 0 : i32
    %61 = vector.broadcast %c0_i32 : i32 to vector<8x128xi32>
    %62 = arith.cmpi eq, %60, %61 : vector<8x128xi32>
    %c1_i32 = arith.constant 1 : i32
    %63 = vector.broadcast %c1_i32 : i32 to vector<8x128xi32>
    %64 = arith.cmpi eq, %60, %63 : vector<8x128xi32>
    %cst_18 = arith.constant 0.000000e+00 : f32
    %65 = vector.broadcast %59 : f32 to vector<8x128xf32>
    %66 = vector.broadcast %cst_18 : f32 to vector<8x128xf32>
    %67 = arith.select %64, %65, %66 : vector<8x128xi1>, vector<8x128xf32>
    %68 = vector.broadcast %30 : f32 to vector<8x128xf32>
    %69 = arith.select %62, %68, %67 : vector<8x128xi1>, vector<8x128xf32>
    %c0_19 = arith.constant 0 : index
    %c0_20 = arith.constant 0 : index
    %70 = vector.load %arg4[%c0_19, %c0_20] : memref<8x128xf32, #tpu.memory_space<vmem>>, vector<8x128xf32>
    tpu.vector_store %arg4[%c0_19, %c0_20], %69 {strides = array<i32>} : memref<8x128xf32, #tpu.memory_space<vmem>>, vector<8x128xf32>,
    return
  }
  func.func @transform_0(%arg0: i32) -> (i32, i32) {
    %c0_i32 = arith.constant 0 : i32
    %c0_i32_0 = arith.constant 0 : i32
    return %arg0, %c0_i32 : i32, i32
  }
  func.func @transform_1(%arg0: i32) -> (i32, i32) {
    %c0_i32 = arith.constant 0 : i32
    %c0_i32_0 = arith.constant 0 : i32
    return %arg0, %c0_i32 : i32, i32
  }
  func.func @transform_2(%arg0: i32) -> (i32, i32) {
    %c0_i32 = arith.constant 0 : i32
    %c0_i32_0 = arith.constant 0 : i32
    return %arg0, %c0_i32 : i32, i32
  }
  func.func @transform_3(%arg0: i32) -> (i32, i32) {
    %c0_i32 = arith.constant 0 : i32
    %c0_i32_0 = arith.constant 0 : i32
    return %arg0, %c0_i32 : i32, i32
  }
}

</mosaic_0001>

<llo_original>
// kernel: tpu_custom_call.1
$region0: #{tpu_custom_call.1}
  #allocation0 [shape = 'u32[]', space=smem, size = 0x4, offset = 0x4, fixed_abs, tag = 'smem constant byte address 0x4 - core index']
  #allocation1 [shape = 'u32[144,128]{1,0:T(1,128)}', space=vmem, size = 0x12000, scoped, tag = 'internal scratch']
  %s0 = inlined_call_operand.vmem [shape: f32[20,32], index: 0, kind: input, shape index: {}]
  %s1 = inlined_call_operand.vmem [shape: s32[20,2], index: 1, kind: input, shape index: {}]
  %s2 = inlined_call_operand.vmem [shape: f32[20,8], index: 2, kind: input, shape index: {}]
  %s3 = inlined_call_operand.hbm [shape: f32[8,128], index: 3, kind: output, shape index: {}]
  %s4 = sld [smem:[#allocation0]]
  $region22: #{tpu_custom_call.1} parent=0
    _
  %s6 = ssub.s32 1, %s4
  %s7 = scalar_select 0, %s6, %s4
  $region1: #{tpu_custom_call.1} parent=0
    #allocation2 [shape = 'u8[4096]{0}', space=vmem, size = 0x1000, scoped, tag = 'output window, operand 0, single buffered']
    #allocation3 [shape = 's32[1]{0}', space=sflag, size = 0x4, scoped, tag = 'scoped memory for tpu_custom_call.1']
    %8 = vsyncpa [#allocation3], 0
    // Predicated region
    $region2: #{tpu_custom_call.1} parent=1 // pred_check
      _
    $region3: #{tpu_custom_call.1} parent=1 // pred_check_branch
      %10 = sbr.rel (0) target = $region5
    $region4: #{tpu_custom_call.1} parent=1 // pred_region
      _
    $region5: #{tpu_custom_call.1} parent=1 // pred_fallthru
      _
    // Predicated region
    $region6: #{tpu_custom_call.1} parent=1 // pred_check
      _
    $region7: #{tpu_custom_call.1} parent=1 // pred_check_branch
      %12 = sbr.rel (0) target = $region9
    $region8: #{tpu_custom_call.1} parent=1 // pred_region
      _
    $region9: #{tpu_custom_call.1} parent=1 // pred_fallthru
      _
    // Predicated region
    $region10: #{tpu_custom_call.1} parent=1 // pred_check
      _
    $region11: #{tpu_custom_call.1} parent=1 // pred_check_branch
      %14 = sbr.rel (0) target = $region13
    $region12: #{tpu_custom_call.1} parent=1 // pred_region
      _
    $region13: #{tpu_custom_call.1} parent=1 // pred_fallthru
      _
    %s15 = smul.u32 0, 20
    %v16 = vld [vmem:[%s1] sm:$0xff]
    %v17 = vld [vmem:[%s1 + $0x8] sm:$0xff]
    %v18 = vld [vmem:[%s1 + $0x10] sm:$0xf]
    %v19 = vld [vmem:[%s0] sm:$0xff]
    %v20 = vld [vmem:[%s0 + $0x8] sm:$0xff]
    %v21 = vld [vmem:[%s0 + $0x10] sm:$0xf]
    %vm22 = vcmask 261120
    %v23 = vsel %vm22, %v19, -inf
    %24 = vmax.xlane.f32.xlu0 %v23
    %v25 = vpop.xlane.xlu0 %24
    %v26 = vsel %vm22, %v20, -inf
    %27 = vmax.xlane.f32.xlu0 %v26
    %v28 = vpop.xlane.xlu0 %27
    %vm29 = vcmask 257024
    %v30 = vsel %vm29, %v21, -inf
    %31 = vmax.xlane.f32.xlu0 %v30
    %v32 = vpop.xlane.xlu0 %31
    %v33 = vsub.f32 %v19, %v25
    %v34 = vsub.f32 %v20, %v28
    %v35 = vsub.f32 %v21, %v32
    %v36 = vmul.f32 %v33, 1.442695
    %v37 = vpow.pop %v36
    %v38 = vmul.f32 %v34, 1.442695
    %v39 = vpow.pop %v38
    %v40 = vmul.f32 %v35, 1.442695
    %v41 = vpow.pop %v40
    %v42 = vsel %vm22, %v37, 0.0
    %43 = vadd.xlane.f32.xlu0 %v42
    %v44 = vpop.xlane.xlu0 %43
    %v45 = vsel %vm22, %v39, 0.0
    %46 = vadd.xlane.f32.xlu0 %v45
    %v47 = vpop.xlane.xlu0 %46
    %v48 = vsel %vm29, %v41, 0.0
    %49 = vadd.xlane.f32.xlu0 %v48
    %v50 = vpop.xlane.xlu0 %49
    %v51 = vlog2.pop %v44
    %v52 = vmul.f32 %v51, 0.6931472
    %v53 = vlog2.pop %v47
    %v54 = vmul.f32 %v53, 0.6931472
    %v55 = vlog2.pop %v50
    %v56 = vmul.f32 %v55, 0.6931472
    %v57 = vlaneseq
    %v58 = vand.u32 %v57, 127
    %59 = vset.pattern.permute.xlu0 0
    %60 = vperm.xlu0 %59, %v16
    %v61 = vpop.permute.xlu0 %60
    %62 = vset.pattern.permute.xlu0 0
    %63 = vperm.xlu0 %62, %v17
    %v64 = vpop.permute.xlu0 %63
    %65 = vset.pattern.permute.xlu0 0
    %66 = vperm.xlu0 %65, %v18
    %v67 = vpop.permute.xlu0 %66
    %vm68 = vcmp.eq.s32.totalorder %v58, %v61
    %vm69 = vcmp.eq.s32.totalorder %v58, %v64
    %vm70 = vcmp.eq.s32.totalorder %v58, %v67
    %v71 = vsel %vm68, %v33, 0.0
    %v72 = vsel %vm69, %v34, 0.0
    %v73 = vsel %vm70, %v35, 0.0
    %v74 = vsel %vm22, %v71, 0.0
    %75 = vadd.xlane.f32.xlu0 %v74
    %v76 = vpop.xlane.xlu0 %75
    %v77 = vsel %vm22, %v72, 0.0
    %78 = vadd.xlane.f32.xlu0 %v77
    %v79 = vpop.xlane.xlu0 %78
    %v80 = vsel %vm29, %v73, 0.0
    %81 = vadd.xlane.f32.xlu0 %v80
    %v82 = vpop.xlane.xlu0 %81
    %v83 = vsub.f32 %v52, %v76
    %v84 = vsub.f32 %v54, %v79
    %v85 = vsub.f32 %v56, %v82
    %v86 = vlaneseq
    %v87 = vshrl.u32 %v86, 7
    %v88 = vadd.s32 %v87, 8
    %v89 = vadd.s32 %v87, 16
    %v90 = vstv %s15
    %v91 = vadd.s32 %v87, %v90
    %v92 = vadd.s32 %v88, %v90
    %v93 = vadd.s32 %v89, %v90
    %vm94 = vcmp.lt.s32.totalorder %v91, 20
    %vm95 = vcmp.lt.s32.totalorder %v92, 20
    %vm96 = vcmp.lt.s32.totalorder %v93, 20
    %v97 = vsel %vm94, %v83, 0.0
    %v98 = vsel %vm95, %v84, 0.0
    %v99 = vsel %vm96, %v85, 0.0
    %vm100 = vcmask 7168
    %v101 = vsel %vm100, %v97, 0.0
    %v102 = vsel %vm100, %v98, 0.0
    %v103 = vadd.f32 %v101, %v102
    %vm104 = vcmask 3072
    %v105 = vsel %vm104, %v99, 0.0
    %v106 = vadd.f32 %v103, %v105
    %107 = vadd.xlane.f32.xlu0 %v106
    %v108 = vpop.xlane.xlu0 %107
    %v109 = vrot.slane %v108, 4
    %v110 = vadd.f32 %v108, %v109
    %v111 = vrot.slane %v110, 2
    %v112 = vadd.f32 %v110, %v111
    %v113 = vrot.slane %v112, 1
    %v114 = vadd.f32 %v112, %v113
    %s115 = vtos %v114
    %v116 = vld [vmem:[%s2] sm:$0xff]
    %v117 = vld [vmem:[%s2 + $0x8] sm:$0xff]
    %v118 = vld [vmem:[%s2 + $0x10] sm:$0xf]
    %vm119 = vcmask 64512
    %v120 = vsel %vm119, %v116, -inf
    %121 = vmax.xlane.f32.xlu0 %v120
    %v122 = vpop.xlane.xlu0 %121
    %v123 = vsel %vm119, %v117, -inf
    %124 = vmax.xlane.f32.xlu0 %v123
    %v125 = vpop.xlane.xlu0 %124
    %vm126 = vcmask 60416
    %v127 = vsel %vm126, %v118, -inf
    %128 = vmax.xlane.f32.xlu0 %v127
    %v129 = vpop.xlane.xlu0 %128
    %v130 = vsub.f32 %v116, %v122
    %v131 = vsub.f32 %v117, %v125
    %v132 = vsub.f32 %v118, %v129
    %v133 = vmul.f32 %v130, 1.442695
    %v134 = vpow.pop %v133
    %v135 = vmul.f32 %v131, 1.442695
    %v136 = vpow.pop %v135
    %v137 = vmul.f32 %v132, 1.442695
    %v138 = vpow.pop %v137
    %v139 = vsel %vm119, %v134, 0.0
    %140 = vadd.xlane.f32.xlu0 %v139
    %v141 = vpop.xlane.xlu0 %140
    %v142 = vsel %vm119, %v136, 0.0
    %143 = vadd.xlane.f32.xlu0 %v142
    %v144 = vpop.xlane.xlu0 %143
    %v145 = vsel %vm126, %v138, 0.0
    %146 = vadd.xlane.f32.xlu0 %v145
    %v147 = vpop.xlane.xlu0 %146
    %v148 = vlog2.pop %v141
    %v149 = vmul.f32 %v148, 0.6931472
    %v150 = vlog2.pop %v144
    %v151 = vmul.f32 %v150, 0.6931472
    %v152 = vlog2.pop %v147
    %v153 = vmul.f32 %v152, 0.6931472
    %154 = vset.pattern.permute.xlu0 1
    %155 = vperm.xlu0 %154, %v16
    %v156 = vpop.permute.xlu0 %155
    %157 = vset.pattern.permute.xlu0 1
    %158 = vperm.xlu0 %157, %v17
    %v159 = vpop.permute.xlu0 %158
    %160 = vset.pattern.permute.xlu0 1
    %161 = vperm.xlu0 %160, %v18
    %v162 = vpop.permute.xlu0 %161
    %vm163 = vcmp.eq.s32.totalorder %v58, %v156
    %vm164 = vcmp.eq.s32.totalorder %v58, %v159
    %vm165 = vcmp.eq.s32.totalorder %v58, %v162
    %v166 = vsel %vm163, %v130, 0.0
    %v167 = vsel %vm164, %v131, 0.0
    %v168 = vsel %vm165, %v132, 0.0
    %v169 = vsel %vm119, %v166, 0.0
    %170 = vadd.xlane.f32.xlu0 %v169
    %v171 = vpop.xlane.xlu0 %170
    %v172 = vsel %vm119, %v167, 0.0
    %173 = vadd.xlane.f32.xlu0 %v172
    %v174 = vpop.xlane.xlu0 %173
    %v175 = vsel %vm126, %v168, 0.0
    %176 = vadd.xlane.f32.xlu0 %v175
    %v177 = vpop.xlane.xlu0 %176
    %v178 = vsub.f32 %v149, %v171
    %v179 = vsub.f32 %v151, %v174
    %v180 = vsub.f32 %v153, %v177
    %v181 = vsel %vm94, %v178, 0.0
    %v182 = vsel %vm95, %v179, 0.0
    %v183 = vsel %vm96, %v180, 0.0
    %v184 = vsel %vm100, %v181, 0.0
    %v185 = vsel %vm100, %v182, 0.0
    %v186 = vadd.f32 %v184, %v185
    %v187 = vsel %vm104, %v183, 0.0
    %v188 = vadd.f32 %v186, %v187
    %189 = vadd.xlane.f32.xlu0 %v188
    %v190 = vpop.xlane.xlu0 %189
    %v191 = vrot.slane %v190, 4
    %v192 = vadd.f32 %v190, %v191
    %v193 = vrot.slane %v192, 2
    %v194 = vadd.f32 %v192, %v193
    %v195 = vrot.slane %v194, 1
    %v196 = vadd.f32 %v194, %v195
    %s197 = vtos %v196
    %vm198 = vcmp.eq.s32.totalorder %v87, 0
    %vm199 = vcmp.eq.s32.totalorder %v87, 1
    %v200 = vstv %s197
    %v201 = vsel %vm199, %v200, 0.0
    %v202 = vstv %s115
    %v203 = vsel %vm198, %v202, %v201
    %204 = vst [vmem:[#allocation2] sm:$0xff] %v203
    // Predicated region
    $region14: #{tpu_custom_call.1} parent=1 // pred_check
      _
    $region15: #{tpu_custom_call.1} parent=1 // pred_check_branch
      %206 = sbr.rel (0) target = $region17
    $region16: #{tpu_custom_call.1} parent=1 // pred_region
      %s208 = ssub.s32 128, 128
      %209 = vsyncadd [#allocation3], %s208
      %s211 = sshll.u32 [#allocation2], 4
      %s212 = int_to_ptr.vmem [resolvable:$true] %s211
      %214 = dma.vmem_to_hbm [thread:$0]  %s212, 128, %s3, [#allocation3]
    $region17: #{tpu_custom_call.1} parent=1 // pred_fallthru
      _
    // Predicated region
    $region18: #{tpu_custom_call.1} parent=1 // pred_check
      _
    $region19: #{tpu_custom_call.1} parent=1 // pred_check_branch
      %216 = sbr.rel (0) target = $region21
    $region20: #{tpu_custom_call.1} parent=1 // pred_region
      %217 = dma.done [#allocation3], 128
    $region21: #{tpu_custom_call.1} parent=1 // pred_fallthru
      _
    %218 = vsyncpa [#allocation3], 1

</llo_original>
